<compile_context>
chip_gen: v7x
topology: tpu7x:2x2x1
jax: 0.10.0
libtpu: 0.0.40
codegen_flags: <defaults>
</compile_context>

<pallas_src>
import functools

import jax
import jax.numpy as jnp
from jax.experimental import pallas as pl
from jax.experimental.pallas import tpu as pltpu

_LANE = 128
_SUBLANE = 8


def _round_up(x, m):
    return ((x + m - 1) // m) * m


def _pad2d(a, rows, cols):
    return jnp.pad(a, ((0, rows - a.shape[0]), (0, cols - a.shape[1])))


def _gin_layer_kernel(a_ref, x_ref, w1_ref, b1_ref, w2_ref, b2_ref, o_ref, acc_ref,
                      *, apply_outer_relu: bool):
    """One GIN layer. Grid = (row_tiles, k_tiles); K axis accumulates Ahat@X."""
    k = pl.program_id(1)

    @pl.when(k == 0)
    def _init():
        acc_ref[...] = jnp.zeros_like(acc_ref)

    # Aggregation: (1+eps)*x_i + sum_{j in N(i)} x_j  ==  Ahat @ X  (bf16 MXU, f32 acc)
    acc_ref[...] += jnp.dot(a_ref[...], x_ref[...],
                            preferred_element_type=jnp.float32)

    @pl.when(k == pl.num_programs(1) - 1)
    def _finalize():
        # MLP epilogue runs once per row tile: Linear -> ReLU -> Linear (+ outer ReLU).
        agg = acc_ref[...].astype(jnp.bfloat16)
        h = jnp.dot(agg, w1_ref[...], preferred_element_type=jnp.float32)
        h = jnp.maximum(h + b1_ref[...], 0.0)
        out = jnp.dot(h.astype(jnp.bfloat16), w2_ref[...],
                      preferred_element_type=jnp.float32) + b2_ref[...]
        if apply_outer_relu:
            out = jnp.maximum(out, 0.0)     # outer F.relu after conv1
        o_ref[...] = out.astype(o_ref.dtype)


def gin_layer(ahat, x, w1, b1, w2, b2, *, apply_outer_relu: bool, tm: int, tk: int):
    """ahat: (Nr, Nc) bf16; x: (Nc, Fp) bf16; w*: bf16 (padded); b*: f32 (1, padded)."""
    n_rows, n_cols = ahat.shape
    f_pad = x.shape[1]
    h_pad = w1.shape[1]
    c_pad = w2.shape[1]
    assert n_rows % tm == 0 and n_cols % tk == 0
    grid = (n_rows // tm, n_cols // tk)

    flops = (2 * n_rows * n_cols * f_pad
             + 2 * n_rows * (f_pad * h_pad + h_pad * c_pad))
    bytes_accessed = (ahat.size * 2 + x.size * 2 + n_rows * c_pad * 4
                      + (w1.size + w2.size) * 2 + (b1.size + b2.size) * 4)

    # Double-buffered input tiles + resident weights/biases/acc/out, 2x headroom,
    # capped well below v7x's 64 MiB physical VMEM.
    vmem_est = (2 * (tm * tk * 2 + tk * f_pad * 2)
                + 2 * ((f_pad * h_pad + h_pad * c_pad) * 2 + (h_pad + c_pad) * 4)
                + tm * f_pad * 4 + 2 * tm * c_pad * 4)
    vmem_limit = int(min(max(2 * vmem_est, 8 << 20), 48 << 20))

    kernel = functools.partial(_gin_layer_kernel, apply_outer_relu=apply_outer_relu)
    return pl.pallas_call(
        kernel,
        out_shape=jax.ShapeDtypeStruct((n_rows, c_pad), jnp.float32),
        grid_spec=pltpu.PrefetchScalarGridSpec(
            num_scalar_prefetch=0,
            grid=grid,
            in_specs=[
                pl.BlockSpec((tm, tk), lambda i, k: (i, k)),         # Ahat tile
                pl.BlockSpec((tk, f_pad), lambda i, k: (k, 0)),      # X tile
                pl.BlockSpec((f_pad, h_pad), lambda i, k: (0, 0)),   # W1 (resident)
                pl.BlockSpec((1, h_pad), lambda i, k: (0, 0)),       # b1
                pl.BlockSpec((h_pad, c_pad), lambda i, k: (0, 0)),   # W2 (resident)
                pl.BlockSpec((1, c_pad), lambda i, k: (0, 0)),       # b2
            ],
            out_specs=pl.BlockSpec((tm, c_pad), lambda i, k: (i, 0)),
            scratch_shapes=[pltpu.VMEM((tm, f_pad), jnp.float32)],
        ),
        compiler_params=pltpu.CompilerParams(
            dimension_semantics=("parallel", "arbitrary"),
            vmem_limit_bytes=vmem_limit,
        ),
        cost_estimate=pl.CostEstimate(
            flops=flops, transcendentals=0, bytes_accessed=bytes_accessed),
    )(ahat, x, w1, b1, w2, b2)


def gin_forward(x, edge_index, params):
    """Full GIN forward: conv1 -> relu -> dropout(eval) -> conv2."""
    n, f_in = x.shape
    hidden = params["w1"].shape[1]
    n_classes = params["w4"].shape[1]

    # Tile sizes: MXU/lane friendly, shrunk for tiny graphs.
    tm = min(256, _round_up(n, _SUBLANE))
    tk = min(512, _round_up(n, _LANE))
    n_rows = _round_up(n, tm)
    n_cols = _round_up(n, tk)

    f_pad = _round_up(f_in, _LANE)
    h_pad = _round_up(hidden, _LANE)
    c_pad = _round_up(n_classes, _LANE)

    # Dense Ahat = A + (1+eps)*I with eps=0;  A[dst, src] = #edges src->dst.
    src, dst = edge_index[0], edge_index[1]
    adj = jnp.zeros((n, n), jnp.float32).at[dst, src].add(1.0)
    ahat = adj + jnp.eye(n, dtype=jnp.float32)
    ahat = _pad2d(ahat, n_rows, n_cols).astype(jnp.bfloat16)  # integer degrees: exact in bf16

    to_bf16 = lambda a, r, c: _pad2d(a, r, c).astype(jnp.bfloat16)
    w1 = to_bf16(params["w1"], f_pad, h_pad)
    w2 = to_bf16(params["w2"], h_pad, h_pad)
    w3 = to_bf16(params["w3"], h_pad, h_pad)
    w4 = to_bf16(params["w4"], h_pad, c_pad)
    b1 = _pad2d(params["b1"], 1, h_pad)
    b2 = _pad2d(params["b2"], 1, h_pad)
    b3 = _pad2d(params["b3"], 1, h_pad)
    b4 = _pad2d(params["b4"], 1, c_pad)

    x_p = to_bf16(x, n_cols, f_pad)

    # conv1 + outer F.relu
    h = gin_layer(ahat, x_p, w1, b1, w2, b2, apply_outer_relu=True, tm=tm, tk=tk)
    # dropout(p=0.5) in eval mode == identity
    h_in = _pad2d(h[:n], n_cols, h_pad).astype(jnp.bfloat16)
    # conv2
    out = gin_layer(ahat, h_in, w3, b3, w4, b4, apply_outer_relu=False, tm=tm, tk=tk)
    return out[:n, :n_classes]


def init_params(key, num_features, hidden_channels, num_classes):
    ks = jax.random.split(key, 8)
    scale = 0.1
    return {
        "w1": scale * jax.random.normal(ks[0], (num_features, hidden_channels), jnp.float32),
        "b1": scale * jax.random.normal(ks[1], (1, hidden_channels), jnp.float32),
        "w2": scale * jax.random.normal(ks[2], (hidden_channels, hidden_channels), jnp.float32),
        "b2": scale * jax.random.normal(ks[3], (1, hidden_channels), jnp.float32),
        "w3": scale * jax.random.normal(ks[4], (hidden_channels, hidden_channels), jnp.float32),
        "b3": scale * jax.random.normal(ks[5], (1, hidden_channels), jnp.float32),
        "w4": scale * jax.random.normal(ks[6], (hidden_channels, num_classes), jnp.float32),
        "b4": scale * jax.random.normal(ks[7], (1, num_classes), jnp.float32),
    }


def gin_reference_f32(x, edge_index, params):
    """Pure-JAX f32 reference (exact PyTorch semantics)."""
    n = x.shape[0]
    adj = jnp.zeros((n, n), jnp.float32).at[edge_index[1], edge_index[0]].add(1.0)
    ahat = adj + jnp.eye(n, dtype=jnp.float32)

    def layer(xx, w1, b1, w2, b2):
        agg = ahat @ xx
        return jnp.maximum(agg @ w1 + b1, 0.0) @ w2 + b2

    h = jnp.maximum(layer(x, params["w1"], params["b1"], params["w2"], params["b2"]), 0.0)
    return layer(h, params["w3"], params["b3"], params["w4"], params["b4"])


def gin_reference_bf16(x, edge_index, params):
    """Pure-JAX reference using the same bf16-operand / f32-accumulate precision as the kernel."""
    n = x.shape[0]
    adj = jnp.zeros((n, n), jnp.float32).at[edge_index[1], edge_index[0]].add(1.0)
    ahat = (adj + jnp.eye(n, dtype=jnp.float32)).astype(jnp.bfloat16)
    bf = jnp.bfloat16
    f32 = jnp.float32

    def dot(a, b):
        return jnp.dot(a.astype(bf), b.astype(bf), preferred_element_type=f32)

    def layer(xx, w1, b1, w2, b2, outer_relu):
        agg = dot(ahat, xx)
        h = jnp.maximum(dot(agg, w1) + b1, 0.0)
        out = dot(h, w2) + b2
        return jnp.maximum(out, 0.0) if outer_relu else out

    h = layer(x, params["w1"], params["b1"], params["w2"], params["b2"], True)
    return layer(h, params["w3"], params["b3"], params["w4"], params["b4"], False)


if __name__ == "__main__":
    key = jax.random.PRNGKey(0)
    k_x, k_e, k_p = jax.random.split(key, 3)

    num_nodes = 16
    num_features = 8
    hidden_channels = 32
    num_classes = 4
    num_edges = 40

    x = jax.random.normal(k_x, (num_nodes, num_features), jnp.float32)
    edge_index = jax.random.randint(k_e, (2, num_edges), 0, num_nodes, jnp.int32)

    params = init_params(k_p, num_features, hidden_channels, num_classes)

    out = gin_forward(x, edge_index, params)
    out = jax.block_until_ready(out)
    assert out.shape == (num_nodes, num_classes)

    # Primary check: precision-matched (bf16 operands, f32 accumulation) reference.
    ref_bf16 = gin_reference_bf16(x, edge_index, params)
    assert jnp.allclose(out, ref_bf16, atol=2e-3, rtol=2e-3), "mismatch vs bf16-matched reference"

    # Secondary sanity check: full-f32 reference (loose tolerance covers bf16 rounding).
    ref_f32 = gin_reference_f32(x, edge_index, params)
    assert jnp.allclose(out, ref_f32, atol=2e-1, rtol=2e-1), "mismatch vs f32 reference"

    print("KERNEL_OK")
</pallas_src>

<mosaic_0001>
module attributes {stable_mosaic.version = 11 : i64} {
  func.func @_gin_layer_kernel(%arg0: i32, %arg1: i32, %arg2: memref<16x128xbf16, #tpu.memory_space<vmem>>, %arg3: memref<128x128xbf16, #tpu.memory_space<vmem>>, %arg4: memref<128x128xbf16, #tpu.memory_space<vmem>>, %arg5: memref<1x128xf32, #tpu.memory_space<vmem>>, %arg6: memref<128x128xbf16, #tpu.memory_space<vmem>>, %arg7: memref<1x128xf32, #tpu.memory_space<vmem>>, %arg8: memref<16x128xf32, #tpu.memory_space<vmem>>, %arg9: memref<16x128xf32, #tpu.memory_space<vmem>>) attributes {dimension_semantics = [#tpu.dimension_semantics<parallel>, #tpu.dimension_semantics<arbitrary>], iteration_bounds = array<i64: 1, 1>, scalar_prefetch = 0 : i64, scratch_operands = 1 : i64, tpu.core_type = #tpu.core_type<tc>, window_params = [{transform_indices = @transform_0, window_bounds = array<i64: 16, 128>}, {transform_indices = @transform_1, window_bounds = array<i64: 128, 128>}, {pipeline_mode = #tpu.pipeline_mode<synchronous>, transform_indices = @transform_2, window_bounds = array<i64: 128, 128>}, {pipeline_mode = #tpu.pipeline_mode<synchronous>, transform_indices = @transform_3, window_bounds = array<i64: 1, 128>}, {pipeline_mode = #tpu.pipeline_mode<synchronous>, transform_indices = @transform_4, window_bounds = array<i64: 128, 128>}, {pipeline_mode = #tpu.pipeline_mode<synchronous>, transform_indices = @transform_5, window_bounds = array<i64: 1, 128>}, {transform_indices = @transform_6, window_bounds = array<i64: 16, 128>}]} {
    %c0_i32 = arith.constant 0 : i32
    %0 = arith.cmpi eq, %arg1, %c0_i32 : i32
    %1 = arith.extui %0 : i1 to i32
    %c0_i32_0 = arith.constant 0 : i32
    %2 = arith.cmpi ne, %1, %c0_i32_0 : i32
    scf.if %2 {
      %cst_10 = arith.constant 0.000000e+00 : f32
      %12 = vector.broadcast %cst_10 : f32 to vector<16x128xf32>
      %c0_11 = arith.constant 0 : index
      %c0_12 = arith.constant 0 : index
      %13 = vector.load %arg9[%c0_11, %c0_12] : memref<16x128xf32, #tpu.memory_space<vmem>>, vector<16x128xf32>
      tpu.vector_store %arg9[%c0_11, %c0_12], %12 {strides = array<i32>} : memref<16x128xf32, #tpu.memory_space<vmem>>, vector<16x128xf32>,
    } else {
    }
    %c0 = arith.constant 0 : index
    %c0_1 = arith.constant 0 : index
    %3 = vector.load %arg9[%c0, %c0_1] : memref<16x128xf32, #tpu.memory_space<vmem>>, vector<16x128xf32>
    %c0_2 = arith.constant 0 : index
    %c0_3 = arith.constant 0 : index
    %4 = vector.load %arg2[%c0_2, %c0_3] : memref<16x128xbf16, #tpu.memory_space<vmem>>, vector<16x128xbf16>
    %c0_4 = arith.constant 0 : index
    %c0_5 = arith.constant 0 : index
    %5 = vector.load %arg3[%c0_4, %c0_5] : memref<128x128xbf16, #tpu.memory_space<vmem>>, vector<128x128xbf16>
    %cst = arith.constant dense<0.000000e+00> : vector<16x128xf32>
    %6 = tpu.matmul %4, %5, %cst {dimension_numbers = #tpu.dot_dimension_numbers<[1], [0], [0], [1], [0, 0, 1, 1], [], []>} : vector<16x128xbf16>, vector<128x128xbf16>, vector<16x128xf32> -> vector<16x128xf32>
    %7 = arith.addf %3, %6 : vector<16x128xf32>
    %c0_6 = arith.constant 0 : index
    %c0_7 = arith.constant 0 : index
    %8 = vector.load %arg9[%c0_6, %c0_7] : memref<16x128xf32, #tpu.memory_space<vmem>>, vector<16x128xf32>
    tpu.vector_store %arg9[%c0_6, %c0_7], %7 {strides = array<i32>} : memref<16x128xf32, #tpu.memory_space<vmem>>, vector<16x128xf32>,
    %c0_i32_8 = arith.constant 0 : i32
    %9 = arith.cmpi eq, %arg1, %c0_i32_8 : i32
    %10 = arith.extui %9 : i1 to i32
    %c0_i32_9 = arith.constant 0 : i32
    %11 = arith.cmpi ne, %10, %c0_i32_9 : i32
    scf.if %11 {
      %c0_10 = arith.constant 0 : index
      %c0_11 = arith.constant 0 : index
      %12 = vector.load %arg9[%c0_10, %c0_11] : memref<16x128xf32, #tpu.memory_space<vmem>>, vector<16x128xf32>
      %13 = arith.truncf %12 : vector<16x128xf32> to vector<16x128xbf16>
      %c0_12 = arith.constant 0 : index
      %c0_13 = arith.constant 0 : index
      %14 = vector.load %arg4[%c0_12, %c0_13] : memref<128x128xbf16, #tpu.memory_space<vmem>>, vector<128x128xbf16>
      %cst_14 = arith.constant dense<0.000000e+00> : vector<16x128xf32>
      %15 = tpu.matmul %13, %14, %cst_14 {dimension_numbers = #tpu.dot_dimension_numbers<[1], [0], [0], [1], [0, 0, 1, 1], [], []>} : vector<16x128xbf16>, vector<128x128xbf16>, vector<16x128xf32> -> vector<16x128xf32>
      %c0_15 = arith.constant 0 : index
      %c0_16 = arith.constant 0 : index
      %16 = vector.load %arg5[%c0_15, %c0_16] : memref<1x128xf32, #tpu.memory_space<vmem>>, vector<1x128xf32>
      %17 = vector.broadcast %16 : vector<1x128xf32> to vector<16x128xf32>
      %18 = arith.addf %15, %17 : vector<16x128xf32>
      %cst_17 = arith.constant 0.000000e+00 : f32
      %19 = vector.broadcast %cst_17 : f32 to vector<16x128xf32>
      %20 = arith.maximumf %18, %19 : vector<16x128xf32>
      %21 = arith.truncf %20 : vector<16x128xf32> to vector<16x128xbf16>
      %c0_18 = arith.constant 0 : index
      %c0_19 = arith.constant 0 : index
      %22 = vector.load %arg6[%c0_18, %c0_19] : memref<128x128xbf16, #tpu.memory_space<vmem>>, vector<128x128xbf16>
      %cst_20 = arith.constant dense<0.000000e+00> : vector<16x128xf32>
      %23 = tpu.matmul %21, %22, %cst_20 {dimension_numbers = #tpu.dot_dimension_numbers<[1], [0], [0], [1], [0, 0, 1, 1], [], []>} : vector<16x128xbf16>, vector<128x128xbf16>, vector<16x128xf32> -> vector<16x128xf32>
      %c0_21 = arith.constant 0 : index
      %c0_22 = arith.constant 0 : index
      %24 = vector.load %arg7[%c0_21, %c0_22] : memref<1x128xf32, #tpu.memory_space<vmem>>, vector<1x128xf32>
      %25 = vector.broadcast %24 : vector<1x128xf32> to vector<16x128xf32>
      %26 = arith.addf %23, %25 : vector<16x128xf32>
      %cst_23 = arith.constant 0.000000e+00 : f32
      %27 = vector.broadcast %cst_23 : f32 to vector<16x128xf32>
      %28 = arith.maximumf %26, %27 : vector<16x128xf32>
      %c0_24 = arith.constant 0 : index
      %c0_25 = arith.constant 0 : index
      %29 = vector.load %arg8[%c0_24, %c0_25] : memref<16x128xf32, #tpu.memory_space<vmem>>, vector<16x128xf32>
      tpu.vector_store %arg8[%c0_24, %c0_25], %28 {strides = array<i32>} : memref<16x128xf32, #tpu.memory_space<vmem>>, vector<16x128xf32>,
    } else {
    }
    return
  }
  func.func @transform_0(%arg0: i32, %arg1: i32) -> (i32, i32) {
    %c0_i32 = arith.constant 0 : i32
    return %arg0, %arg1 : i32, i32
  }
  func.func @transform_1(%arg0: i32, %arg1: i32) -> (i32, i32) {
    %c0_i32 = arith.constant 0 : i32
    %c0_i32_0 = arith.constant 0 : i32
    return %arg1, %c0_i32 : i32, i32
  }
  func.func @transform_2(%arg0: i32, %arg1: i32) -> (i32, i32) {
    %c0_i32 = arith.constant 0 : i32
    %c0_i32_0 = arith.constant 0 : i32
    %c0_i32_1 = arith.constant 0 : i32
    return %c0_i32, %c0_i32_0 : i32, i32
  }
  func.func @transform_3(%arg0: i32, %arg1: i32) -> (i32, i32) {
    %c0_i32 = arith.constant 0 : i32
    %c0_i32_0 = arith.constant 0 : i32
    %c0_i32_1 = arith.constant 0 : i32
    return %c0_i32, %c0_i32_0 : i32, i32
  }
  func.func @transform_4(%arg0: i32, %arg1: i32) -> (i32, i32) {
    %c0_i32 = arith.constant 0 : i32
    %c0_i32_0 = arith.constant 0 : i32
    %c0_i32_1 = arith.constant 0 : i32
    return %c0_i32, %c0_i32_0 : i32, i32
  }
  func.func @transform_5(%arg0: i32, %arg1: i32) -> (i32, i32) {
    %c0_i32 = arith.constant 0 : i32
    %c0_i32_0 = arith.constant 0 : i32
    %c0_i32_1 = arith.constant 0 : i32
    return %c0_i32, %c0_i32_0 : i32, i32
  }
  func.func @transform_6(%arg0: i32, %arg1: i32) -> (i32, i32) {
    %c0_i32 = arith.constant 0 : i32
    %c0_i32_0 = arith.constant 0 : i32
    return %arg0, %c0_i32 : i32, i32
  }
}

</mosaic_0001>

<llo_original>
// kernel: tpu_custom_call.1
$region0: #{tpu_custom_call.1}
  #allocation0 [shape = 'u32[]', space=smem, size = 0x4, offset = 0x4, fixed_abs, tag = 'smem constant byte address 0x4 - core index']
  #allocation1 [shape = 'u32[144,128]{1,0:T(1,128)}', space=vmem, size = 0x12000, scoped, tag = 'internal scratch']
  #allocation2 [shape = 'f32[16,128]{1,0:T(8,128)}', space=vmem, size = 0x2000, scoped, tag = 'scratch operand']
  %s0 = inlined_call_operand.hbm [shape: bf16[16,128], index: 0, kind: input, shape index: {}]
  %s1 = inlined_call_operand.hbm [shape: bf16[128,128], index: 1, kind: input, shape index: {}]
  %s2 = inlined_call_operand.hbm [shape: bf16[128,128], index: 2, kind: input, shape index: {}]
  %s3 = inlined_call_operand.vmem [shape: f32[1,128], index: 3, kind: input, shape index: {}]
  %s4 = inlined_call_operand.hbm [shape: bf16[128,128], index: 4, kind: input, shape index: {}]
  %s5 = inlined_call_operand.vmem [shape: f32[1,128], index: 5, kind: input, shape index: {}]
  %s6 = inlined_call_operand.hbm [shape: f32[16,128], index: 6, kind: output, shape index: {}]
  %s7 = sld [smem:[#allocation0]]
  $region58: #{tpu_custom_call.1} parent=0
    _
  %s9 = ssub.s32 1, %s7
  %s10 = scalar_select 0, %s9, %s7
  $region1: #{tpu_custom_call.1} parent=0
    #allocation3 [shape = 'u8[4096]{0}', space=vmem, size = 0x1000, scoped, tag = 'input window, operand 0, single buffered']
    #allocation4 [shape = 's32[1]{0}', space=sflag, size = 0x4, scoped, tag = 'scoped memory for tpu_custom_call.1']
    #allocation5 [shape = 's32[1]{0}', space=sflag, size = 0x4, scoped, tag = 'scoped memory for tpu_custom_call.1']
    #allocation6 [shape = 'u8[32768]{0}', space=vmem, size = 0x8000, scoped, tag = 'input window, operand 1, single buffered']
    #allocation7 [shape = 's32[1]{0}', space=sflag, size = 0x4, scoped, tag = 'scoped memory for tpu_custom_call.1']
    #allocation8 [shape = 'u8[32768]{0}', space=vmem, size = 0x8000, scoped, tag = 'input window, operand 2, single buffered']
    #allocation9 [shape = 'u8[32768]{0}', space=vmem, size = 0x8000, scoped, tag = 'input window, operand 4, single buffered']
    #allocation10 [shape = 's32[1]{0}', space=sflag, size = 0x4, scoped, tag = 'scoped memory for tpu_custom_call.1']
    #allocation11 [shape = 'u8[8192]{0}', space=vmem, size = 0x2000, scoped, tag = 'output window, operand 0, single buffered']
    %11 = vsyncpa [#allocation4], 0
    %12 = vsyncpa [#allocation7], 0
    %13 = vsyncpa [#allocation10], 0
    %14 = vsyncpa [#allocation5], 0
    // Predicated region
    $region2: #{tpu_custom_call.1} parent=1 // pred_check
      _
    $region3: #{tpu_custom_call.1} parent=1 // pred_check_branch
      %16 = sbr.rel (0) target = $region5
    $region4: #{tpu_custom_call.1} parent=1 // pred_region
      %s18 = ssub.s32 128, 128
      %19 = vsyncadd [#allocation4], %s18
      %s20 = sshll.u32 [#allocation3], 4
      %s21 = int_to_ptr.vmem [resolvable:$true] %s20
      %26 = dma.hbm_to_vmem [thread:$0]  %s0, 128, %s21, [#allocation4], 64, 64, 4
    $region5: #{tpu_custom_call.1} parent=1 // pred_fallthru
      _
    // Predicated region
    $region6: #{tpu_custom_call.1} parent=1 // pred_check
      _
    $region7: #{tpu_custom_call.1} parent=1 // pred_check_branch
      %28 = sbr.rel (0) target = $region9
    $region8: #{tpu_custom_call.1} parent=1 // pred_region
      %s30 = ssub.s32 1024, 1024
      %31 = vsyncadd [#allocation7], %s30
      %s32 = sshll.u32 [#allocation6], 4
      %s33 = int_to_ptr.vmem [resolvable:$true] %s32
      %38 = dma.hbm_to_vmem [thread:$0]  %s1, 1024, %s33, [#allocation7], 64, 64, 4
    $region9: #{tpu_custom_call.1} parent=1 // pred_fallthru
      _
    // Predicated region
    $region10: #{tpu_custom_call.1} parent=1 // pred_check
      _
    $region11: #{tpu_custom_call.1} parent=1 // pred_check_branch
      %40 = sbr.rel (0) target = $region13
    $region12: #{tpu_custom_call.1} parent=1 // pred_region
      %s42 = ssub.s32 1024, 1024
      %43 = vsyncadd [#allocation7], %s42
      %s44 = sshll.u32 [#allocation8], 4
      %s45 = int_to_ptr.vmem [resolvable:$true] %s44
      %50 = dma.hbm_to_vmem [thread:$0]  %s2, 1024, %s45, [#allocation7], 64, 64, 4
    $region13: #{tpu_custom_call.1} parent=1 // pred_fallthru
      _
    // Predicated region
    $region14: #{tpu_custom_call.1} parent=1 // pred_check
      _
    $region15: #{tpu_custom_call.1} parent=1 // pred_check_branch
      %52 = sbr.rel (0) target = $region17
    $region16: #{tpu_custom_call.1} parent=1 // pred_region
      _
    $region17: #{tpu_custom_call.1} parent=1 // pred_fallthru
      _
    // Predicated region
    $region18: #{tpu_custom_call.1} parent=1 // pred_check
      _
    $region19: #{tpu_custom_call.1} parent=1 // pred_check_branch
      %54 = sbr.rel (0) target = $region21
    $region20: #{tpu_custom_call.1} parent=1 // pred_region
      %s56 = ssub.s32 1024, 1024
      %57 = vsyncadd [#allocation10], %s56
      %s58 = sshll.u32 [#allocation9], 4
      %s59 = int_to_ptr.vmem [resolvable:$true] %s58
      %64 = dma.hbm_to_vmem [thread:$0]  %s4, 1024, %s59, [#allocation10], 64, 64, 4
    $region21: #{tpu_custom_call.1} parent=1 // pred_fallthru
      _
    // Predicated region
    $region22: #{tpu_custom_call.1} parent=1 // pred_check
      _
    $region23: #{tpu_custom_call.1} parent=1 // pred_check_branch
      %66 = sbr.rel (0) target = $region25
    $region24: #{tpu_custom_call.1} parent=1 // pred_region
      _
    $region25: #{tpu_custom_call.1} parent=1 // pred_fallthru
      _
    // Predicated region
    $region26: #{tpu_custom_call.1} parent=1 // pred_check
      _
    $region27: #{tpu_custom_call.1} parent=1 // pred_check_branch
      %68 = sbr.rel (0) target = $region29
    $region28: #{tpu_custom_call.1} parent=1 // pred_region
      %69 = dma.done [#allocation4], 128
    $region29: #{tpu_custom_call.1} parent=1 // pred_fallthru
      _
    // Predicated region
    $region30: #{tpu_custom_call.1} parent=1 // pred_check
      _
    $region31: #{tpu_custom_call.1} parent=1 // pred_check_branch
      %71 = sbr.rel (0) target = $region33
    $region32: #{tpu_custom_call.1} parent=1 // pred_region
      %72 = dma.done [#allocation7], 1024
    $region33: #{tpu_custom_call.1} parent=1 // pred_fallthru
      _
    // Predicated region
    $region34: #{tpu_custom_call.1} parent=1 // pred_check
      _
    $region35: #{tpu_custom_call.1} parent=1 // pred_check_branch
      %74 = sbr.rel (0) target = $region37
    $region36: #{tpu_custom_call.1} parent=1 // pred_region
      %75 = dma.done [#allocation7], 1024
    $region37: #{tpu_custom_call.1} parent=1 // pred_fallthru
      _
    // Predicated region
    $region38: #{tpu_custom_call.1} parent=1 // pred_check
      _
    $region39: #{tpu_custom_call.1} parent=1 // pred_check_branch
      %77 = sbr.rel (0) target = $region41
    $region40: #{tpu_custom_call.1} parent=1 // pred_region
      %78 = dma.done [#allocation10], 1024
    $region41: #{tpu_custom_call.1} parent=1 // pred_fallthru
      _
    %p80 = scmp.eq.s32.totalorder 0, 0
    // Predicated region
    $region42: #{tpu_custom_call.1} parent=1 // pred_check
      %p81 = pneg %p80
    $region43: #{tpu_custom_call.1} parent=1 // pred_check_branch
      %83 = sbr.rel (%p81) target = $region45
    $region44: #{tpu_custom_call.1} parent=1 // pred_region
      %84 = vst [vmem:[#allocation2] sm:$0xff] 0.0
      %85 = vst [vmem:[#allocation2 + $0x8] sm:$0xff] 0.0
    $region45: #{tpu_custom_call.1} parent=1 // pred_fallthru
      _
    %v86 = vld [vmem:[#allocation2] sm:$0xff]
    %v87 = vld [vmem:[#allocation2 + $0x8] sm:$0xff]
    %v88 = vld [vmem:[#allocation3] sm:$0xf]
    %v89 = vld [vmem:[#allocation3 + $0x4] sm:$0xf]
    %v90 = vld [vmem:[#allocation6] sm:$0xf]
    %v91 = vld [vmem:[#allocation6 + $0x4] sm:$0xf]
    %v92 = vld [vmem:[#allocation6 + $0x8] sm:$0xf]
    %v93 = vld [vmem:[#allocation6 + $0xc] sm:$0xf]
    %v94 = vld [vmem:[#allocation6 + $0x10] sm:$0xf]
    %v95 = vld [vmem:[#allocation6 + $0x14] sm:$0xf]
    %v96 = vld [vmem:[#allocation6 + $0x18] sm:$0xf]
    %v97 = vld [vmem:[#allocation6 + $0x1c] sm:$0xf]
    %v98 = vld [vmem:[#allocation6 + $0x20] sm:$0xf]
    %v99 = vld [vmem:[#allocation6 + $0x24] sm:$0xf]
    %v100 = vld [vmem:[#allocation6 + $0x28] sm:$0xf]
    %v101 = vld [vmem:[#allocation6 + $0x2c] sm:$0xf]
    %v102 = vld [vmem:[#allocation6 + $0x30] sm:$0xf]
    %v103 = vld [vmem:[#allocation6 + $0x34] sm:$0xf]
    %v104 = vld [vmem:[#allocation6 + $0x38] sm:$0xf]
    %v105 = vld [vmem:[#allocation6 + $0x3c] sm:$0xf]
    %v108 = vunpack.c.l.b16 %v88
    %v109 = vunpack.c.l.b16 %v89
    %v110 = vpack.c.b16 %v109, %v108
    %v128 = vunpack.c.l.b16 %v90
    %v129 = vunpack.c.l.b16 %v91
    %v130 = vunpack.c.l.b16 %v92
    %v131 = vunpack.c.l.b16 %v93
    %v132 = vunpack.c.l.b16 %v94
    %v133 = vunpack.c.l.b16 %v95
    %v134 = vunpack.c.l.b16 %v96
    %v135 = vunpack.c.l.b16 %v97
    %v136 = vunpack.c.l.b16 %v98
    %v137 = vunpack.c.l.b16 %v99
    %v138 = vunpack.c.l.b16 %v100
    %v139 = vunpack.c.l.b16 %v101
    %v140 = vunpack.c.l.b16 %v102
    %v141 = vunpack.c.l.b16 %v103
    %v142 = vunpack.c.l.b16 %v104
    %v143 = vunpack.c.l.b16 %v105
    %v144 = vpack.c.b16 %v129, %v128
    %v145 = vpack.c.b16 %v131, %v130
    %v146 = vpack.c.b16 %v133, %v132
    %v147 = vpack.c.b16 %v135, %v134
    %v148 = vpack.c.b16 %v137, %v136
    %v149 = vpack.c.b16 %v139, %v138
    %v150 = vpack.c.b16 %v141, %v140
    %v151 = vpack.c.b16 %v143, %v142
    %160 = vmatprep.subr.bf16.mxu0 0
    %161 = vmatpush1.bf16.msra.mxu0 %v144
    %162 = vmatprep.subr.bf16.mxu0 0
    %163 = vmatpush1.bf16.msra.mxu0 %v145
    %164 = vmatprep.subr.bf16.mxu0 0
    %165 = vmatpush1.bf16.msra.mxu0 %v146
    %166 = vmatprep.subr.bf16.mxu0 0
    %167 = vmatpush1.bf16.msra.mxu0 %v147
    %168 = vmatprep.subr.bf16.mxu0 0
    %169 = vmatpush1.bf16.msra.mxu0 %v148
    %170 = vmatprep.subr.bf16.mxu0 0
    %171 = vmatpush1.bf16.msra.mxu0 %v149
    %172 = vmatprep.subr.bf16.mxu0 0
    %173 = vmatpush1.bf16.msra.mxu0 %v150
    %174 = vmatprep.subr.bf16.mxu0 0
    %175 = vmatpush1.bf16.msra.mxu0 %v151
    %176 = vmatprep.subr.bf16.mxu0 0
    %177 = vmatpush1.bf16.msra.mxu0 0
    %178 = vmatprep.subr.bf16.mxu0 0
    %179 = vmatpush1.bf16.msra.mxu0 0
    %180 = vmatprep.subr.bf16.mxu0 0
    %181 = vmatpush1.bf16.msra.mxu0 0
    %182 = vmatprep.subr.bf16.mxu0 0
    %183 = vmatpush1.bf16.msra.mxu0 0
    %184 = vmatprep.subr.bf16.mxu0 0
    %185 = vmatpush1.bf16.msra.mxu0 0
    %186 = vmatprep.subr.bf16.mxu0 0
    %187 = vmatpush1.bf16.msra.mxu0 0
    %188 = vmatprep.subr.bf16.mxu0 0
    %189 = vmatpush1.bf16.msra.mxu0 0
    %190 = vmatprep.subr.bf16.mxu0 0
    %191 = vmatpush1.bf16.msra.mxu0 0
    %192 = vmatprep.mubr.bf16.mxu0 0
    %193 = vmatmul.mubr.bf16.gmra.mrb[0].mxu0 %v110
    %v194 = vpop.f32.mrb[0].mxu0
    %v195 = vadd.f32 0.0, %v194
    %v196 = vpop.f32.mrb[0].mxu0
    %v197 = vpop.f32.mrb[0].mxu0
    %v198 = vadd.f32 0.0, %v197
    %v199 = vpop.f32.mrb[0].mxu0
    %200 = vdwg.mxu0
    %v201 = vadd.f32 %v86, %v195
    %v202 = vadd.f32 %v87, %v198
    %203 = vst [vmem:[#allocation2] sm:$0xff] %v201
    %204 = vst [vmem:[#allocation2 + $0x8] sm:$0xff] %v202
    // Predicated region
    $region46: #{tpu_custom_call.1} parent=1 // pred_check
      %p205 = pneg %p80
    $region47: #{tpu_custom_call.1} parent=1 // pred_check_branch
      %207 = sbr.rel (%p205) target = $region49
    $region48: #{tpu_custom_call.1} parent=1 // pred_region
      %v208 = vld [vmem:[#allocation2] sm:$0xff]
      %v209 = vld [vmem:[#allocation2 + $0x8] sm:$0xff]
      %v210 = vpack.c.bf16 %v209, %v208
      %v211 = vld [vmem:[#allocation8] sm:$0xf]
      %v212 = vld [vmem:[#allocation8 + $0x4] sm:$0xf]
      %v213 = vld [vmem:[#allocation8 + $0x8] sm:$0xf]
      %v214 = vld [vmem:[#allocation8 + $0xc] sm:$0xf]
      %v215 = vld [vmem:[#allocation8 + $0x10] sm:$0xf]
      %v216 = vld [vmem:[#allocation8 + $0x14] sm:$0xf]
      %v217 = vld [vmem:[#allocation8 + $0x18] sm:$0xf]
      %v218 = vld [vmem:[#allocation8 + $0x1c] sm:$0xf]
      %v219 = vld [vmem:[#allocation8 + $0x20] sm:$0xf]
      %v220 = vld [vmem:[#allocation8 + $0x24] sm:$0xf]
      %v221 = vld [vmem:[#allocation8 + $0x28] sm:$0xf]
      %v222 = vld [vmem:[#allocation8 + $0x2c] sm:$0xf]
      %v223 = vld [vmem:[#allocation8 + $0x30] sm:$0xf]
      %v224 = vld [vmem:[#allocation8 + $0x34] sm:$0xf]
      %v225 = vld [vmem:[#allocation8 + $0x38] sm:$0xf]
      %v226 = vld [vmem:[#allocation8 + $0x3c] sm:$0xf]
      %v227 = vld [vmem:[%s3] sm:$0x1]
      %v229 = vlaneseq
      %v230 = vshrl.u32 %v229, 7
      %v231 = vsub.s32 0, %v230
      %v232 = vrot.slane %v227, %v231
      %v250 = vunpack.c.l.b16 %v211
      %v251 = vunpack.c.l.b16 %v212
      %v252 = vunpack.c.l.b16 %v213
      %v253 = vunpack.c.l.b16 %v214
      %v254 = vunpack.c.l.b16 %v215
      %v255 = vunpack.c.l.b16 %v216
      %v256 = vunpack.c.l.b16 %v217
      %v257 = vunpack.c.l.b16 %v218
      %v258 = vunpack.c.l.b16 %v219
      %v259 = vunpack.c.l.b16 %v220
      %v260 = vunpack.c.l.b16 %v221
      %v261 = vunpack.c.l.b16 %v222
      %v262 = vunpack.c.l.b16 %v223
      %v263 = vunpack.c.l.b16 %v224
      %v264 = vunpack.c.l.b16 %v225
      %v265 = vunpack.c.l.b16 %v226
      %v266 = vpack.c.b16 %v251, %v250
      %v267 = vpack.c.b16 %v253, %v252
      %v268 = vpack.c.b16 %v255, %v254
      %v269 = vpack.c.b16 %v257, %v256
      %v270 = vpack.c.b16 %v259, %v258
      %v271 = vpack.c.b16 %v261, %v260
      %v272 = vpack.c.b16 %v263, %v262
      %v273 = vpack.c.b16 %v265, %v264
      %282 = vmatprep.subr.bf16.mxu0 0
      %283 = vmatpush1.bf16.msra.mxu0 %v266
      %284 = vmatprep.subr.bf16.mxu0 0
      %285 = vmatpush1.bf16.msra.mxu0 %v267
      %286 = vmatprep.subr.bf16.mxu0 0
      %287 = vmatpush1.bf16.msra.mxu0 %v268
      %288 = vmatprep.subr.bf16.mxu0 0
      %289 = vmatpush1.bf16.msra.mxu0 %v269
      %290 = vmatprep.subr.bf16.mxu0 0
      %291 = vmatpush1.bf16.msra.mxu0 %v270
      %292 = vmatprep.subr.bf16.mxu0 0
      %293 = vmatpush1.bf16.msra.mxu0 %v271
      %294 = vmatprep.subr.bf16.mxu0 0
      %295 = vmatpush1.bf16.msra.mxu0 %v272
      %296 = vmatprep.subr.bf16.mxu0 0
      %297 = vmatpush1.bf16.msra.mxu0 %v273
      %298 = vmatprep.subr.bf16.mxu0 0
      %299 = vmatpush1.bf16.msra.mxu0 0
      %300 = vmatprep.subr.bf16.mxu0 0
      %301 = vmatpush1.bf16.msra.mxu0 0
      %302 = vmatprep.subr.bf16.mxu0 0
      %303 = vmatpush1.bf16.msra.mxu0 0
      %304 = vmatprep.subr.bf16.mxu0 0
      %305 = vmatpush1.bf16.msra.mxu0 0
      %306 = vmatprep.subr.bf16.mxu0 0
      %307 = vmatpush1.bf16.msra.mxu0 0
      %308 = vmatprep.subr.bf16.mxu0 0
      %309 = vmatpush1.bf16.msra.mxu0 0
      %310 = vmatprep.subr.bf16.mxu0 0
      %311 = vmatpush1.bf16.msra.mxu0 0
      %312 = vmatprep.subr.bf16.mxu0 0
      %313 = vmatpush1.bf16.msra.mxu0 0
      %314 = vmatprep.mubr.bf16.mxu0 0
      %315 = vmatmul.mubr.bf16.gmra.mrb[0].mxu0 %v210
      %v316 = vpop.f32.mrb[0].mxu0
      %v317 = vadd.f32 %v232, %v316
      %v318 = vpop.f32.mrb[0].mxu0
      %v319 = vpop.f32.mrb[0].mxu0
      %v320 = vadd.f32 %v232, %v319
      %v321 = vpop.f32.mrb[0].mxu0
      %322 = vdwg.mxu0
      %v323 = vmax.f32 %v317, 0.0
      %v324 = vmax.f32 %v320, 0.0
      %v325 = vpack.c.bf16 %v324, %v323
      %v326 = vld [vmem:[#allocation9] sm:$0xf]
      %v327 = vld [vmem:[#allocation9 + $0x4] sm:$0xf]
      %v328 = vld [vmem:[#allocation9 + $0x8] sm:$0xf]
      %v329 = vld [vmem:[#allocation9 + $0xc] sm:$0xf]
      %v330 = vld [vmem:[#allocation9 + $0x10] sm:$0xf]
      %v331 = vld [vmem:[#allocation9 + $0x14] sm:$0xf]
      %v332 = vld [vmem:[#allocation9 + $0x18] sm:$0xf]
      %v333 = vld [vmem:[#allocation9 + $0x1c] sm:$0xf]
      %v334 = vld [vmem:[#allocation9 + $0x20] sm:$0xf]
      %v335 = vld [vmem:[#allocation9 + $0x24] sm:$0xf]
      %v336 = vld [vmem:[#allocation9 + $0x28] sm:$0xf]
      %v337 = vld [vmem:[#allocation9 + $0x2c] sm:$0xf]
      %v338 = vld [vmem:[#allocation9 + $0x30] sm:$0xf]
      %v339 = vld [vmem:[#allocation9 + $0x34] sm:$0xf]
      %v340 = vld [vmem:[#allocation9 + $0x38] sm:$0xf]
      %v341 = vld [vmem:[#allocation9 + $0x3c] sm:$0xf]
      %v342 = vld [vmem:[%s5] sm:$0x1]
      %v344 = vlaneseq
      %v345 = vshrl.u32 %v344, 7
      %v346 = vsub.s32 0, %v345
      %v347 = vrot.slane %v342, %v346
      %v365 = vunpack.c.l.b16 %v326
      %v366 = vunpack.c.l.b16 %v327
      %v367 = vunpack.c.l.b16 %v328
      %v368 = vunpack.c.l.b16 %v329
      %v369 = vunpack.c.l.b16 %v330
      %v370 = vunpack.c.l.b16 %v331
      %v371 = vunpack.c.l.b16 %v332
      %v372 = vunpack.c.l.b16 %v333
      %v373 = vunpack.c.l.b16 %v334
      %v374 = vunpack.c.l.b16 %v335
      %v375 = vunpack.c.l.b16 %v336
      %v376 = vunpack.c.l.b16 %v337
      %v377 = vunpack.c.l.b16 %v338
      %v378 = vunpack.c.l.b16 %v339
      %v379 = vunpack.c.l.b16 %v340
      %v380 = vunpack.c.l.b16 %v341
      %v381 = vpack.c.b16 %v366, %v365
      %v382 = vpack.c.b16 %v368, %v367
      %v383 = vpack.c.b16 %v370, %v369
      %v384 = vpack.c.b16 %v372, %v371
      %v385 = vpack.c.b16 %v374, %v373
      %v386 = vpack.c.b16 %v376, %v375
      %v387 = vpack.c.b16 %v378, %v377
      %v388 = vpack.c.b16 %v380, %v379
      %397 = vmatprep.subr.bf16.mxu0 0
      %398 = vmatpush1.bf16.msra.mxu0 %v381
      %399 = vmatprep.subr.bf16.mxu0 0
      %400 = vmatpush1.bf16.msra.mxu0 %v382
      %401 = vmatprep.subr.bf16.mxu0 0
      %402 = vmatpush1.bf16.msra.mxu0 %v383
      %403 = vmatprep.subr.bf16.mxu0 0
      %404 = vmatpush1.bf16.msra.mxu0 %v384
      %405 = vmatprep.subr.bf16.mxu0 0
      %406 = vmatpush1.bf16.msra.mxu0 %v385
      %407 = vmatprep.subr.bf16.mxu0 0
      %408 = vmatpush1.bf16.msra.mxu0 %v386
      %409 = vmatprep.subr.bf16.mxu0 0
      %410 = vmatpush1.bf16.msra.mxu0 %v387
      %411 = vmatprep.subr.bf16.mxu0 0
      %412 = vmatpush1.bf16.msra.mxu0 %v388
      %413 = vmatprep.subr.bf16.mxu0 0
      %414 = vmatpush1.bf16.msra.mxu0 0
      %415 = vmatprep.subr.bf16.mxu0 0
      %416 = vmatpush1.bf16.msra.mxu0 0
      %417 = vmatprep.subr.bf16.mxu0 0
      %418 = vmatpush1.bf16.msra.mxu0 0
      %419 = vmatprep.subr.bf16.mxu0 0
      %420 = vmatpush1.bf16.msra.mxu0 0
      %421 = vmatprep.subr.bf16.mxu0 0
      %422 = vmatpush1.bf16.msra.mxu0 0
      %423 = vmatprep.subr.bf16.mxu0 0
      %424 = vmatpush1.bf16.msra.mxu0 0
      %425 = vmatprep.subr.bf16.mxu0 0
      %426 = vmatpush1.bf16.msra.mxu0 0
      %427 = vmatprep.subr.bf16.mxu0 0
      %428 = vmatpush1.bf16.msra.mxu0 0
      %429 = vmatprep.mubr.bf16.mxu0 0
      %430 = vmatmul.mubr.bf16.gmra.mrb[0].mxu0 %v325
      %v431 = vpop.f32.mrb[0].mxu0
      %v432 = vadd.f32 %v347, %v431
      %v433 = vpop.f32.mrb[0].mxu0
      %v434 = vpop.f32.mrb[0].mxu0
      %v435 = vadd.f32 %v347, %v434
      %v436 = vpop.f32.mrb[0].mxu0
      %437 = vdwg.mxu0
      %v438 = vmax.f32 %v432, 0.0
      %v439 = vmax.f32 %v435, 0.0
      %440 = vst [vmem:[#allocation11] sm:$0xff] %v438
      %441 = vst [vmem:[#allocation11 + $0x8] sm:$0xff] %v439
    $region49: #{tpu_custom_call.1} parent=1 // pred_fallthru
      _
    // Predicated region
    $region50: #{tpu_custom_call.1} parent=1 // pred_check
      _
    $region51: #{tpu_custom_call.1} parent=1 // pred_check_branch
      %443 = sbr.rel (0) target = $region53
    $region52: #{tpu_custom_call.1} parent=1 // pred_region
      %s445 = ssub.s32 256, 256
      %446 = vsyncadd [#allocation5], %s445
      %s447 = sshll.u32 [#allocation11], 4
      %s448 = int_to_ptr.vmem [resolvable:$true] %s447
      %453 = dma.vmem_to_hbm [thread:$0]  %s448, 256, %s6, [#allocation5], 128, 128, 8
    $region53: #{tpu_custom_call.1} parent=1 // pred_fallthru
      _
    // Predicated region
    $region54: #{tpu_custom_call.1} parent=1 // pred_check
      _
    $region55: #{tpu_custom_call.1} parent=1 // pred_check_branch
      %455 = sbr.rel (0) target = $region57
    $region56: #{tpu_custom_call.1} parent=1 // pred_region
      %456 = dma.done [#allocation5], 256
    $region57: #{tpu_custom_call.1} parent=1 // pred_fallthru
      _
    %457 = vsyncpa [#allocation4], 1
    %458 = vsyncpa [#allocation7], 1
    %459 = vsyncpa [#allocation10], 1
    %460 = vsyncpa [#allocation5], 1

</llo_original>
